<compile_context>
chip_gen: v7x
topology: tpu7x:2x2x1
jax: 0.10.0
libtpu: 0.0.40
codegen_flags: <defaults>
</compile_context>

<pallas_src>
import functools
import math

import jax
import jax.numpy as jnp
from jax.experimental import pallas as pl
from jax.experimental.pallas import tpu as pltpu


# ---------------------------------------------------------------------------
# Fused Pallas kernel: all Linear->ReLU layers + final Linear(d->1) per row tile
# ---------------------------------------------------------------------------
def _predictor_kernel(x_ref, *refs, num_hidden: int):
    """refs = (w0, b0, w1, b1, ..., w_last, b_last, o_ref).

    x_ref  : (TILE_M, D)   f32   (row tile of the flattened input)
    wi     : (d_in, d_out) bf16  (resident; pre-transposed from PyTorch (out, in))
    bi     : (1, d_out)    f32   (resident)
    w_last : (1, d_last)   f32   (resident; final layer weight row)
    b_last : (1, 1)        f32   (resident)
    o_ref  : (TILE_M, 1)   f32
    """
    o_ref = refs[-1]

    # Cast to bf16 in-kernel for the MXU path (free VPU work under the input DMA).
    h = x_ref[...].astype(jnp.bfloat16)

    # Hidden Linear -> ReLU layers on the MXU, f32 accumulation, f32 bias/ReLU.
    for layer in range(num_hidden):
        w = refs[2 * layer][...]            # (d_in, d_out) bf16
        b = refs[2 * layer + 1][...]        # (1, d_out)    f32
        y = jnp.dot(h, w, preferred_element_type=jnp.float32) + b
        y = jnp.maximum(y, 0.0)
        h = y.astype(jnp.bfloat16)

    # Final d_last -> 1 layer on the VPU/XLU: multiply + lane reduction (no MXU).
    w_last = refs[2 * num_hidden][...]      # (1, d_last) f32
    b_last = refs[2 * num_hidden + 1][...]  # (1, 1)      f32
    col = jnp.sum(h.astype(jnp.float32) * w_last, axis=-1, keepdims=True) + b_last
    o_ref[...] = col.astype(o_ref.dtype)


def _round_up(x: int, m: int) -> int:
    return ((x + m - 1) // m) * m


def _choose_tile_m(m: int, cap: int = 1024) -> int:
    # Multiple of 8 sublanes (we use multiples of 128); sized well under scoped VMEM
    # on every TPU generation (v5e/v6e 128 MiB, v7x 64 MiB physical).
    return min(cap, _round_up(m, 128))


# ---------------------------------------------------------------------------
# Parameter construction (mirrors Predictor.__init__ shapes / init)
# ---------------------------------------------------------------------------
def init_predictor_params(key, dim: int, linear_layers: int):
    """Returns (hidden, (w_last, b_last)).

    hidden: list of (w_t bf16 (d_in, d_out), b f32 (1, d_out)) for Linear->ReLU layers.
    w_last: f32 (1, d_last) weight row of the final Linear(d_last, 1); b_last f32 (1,1).
    """
    hidden = []
    d = dim
    for _ in range(linear_layers - 1):
        d_in, d_out = d, d // 2
        key, kw, kb = jax.random.split(key, 3)
        bound_w = math.sqrt(6.0 / (d_in + d_out))          # xavier_uniform_
        w = jax.random.uniform(kw, (d_out, d_in), jnp.float32, -bound_w, bound_w)
        bound_b = 1.0 / math.sqrt(d_in)                    # PyTorch Linear bias default
        b = jax.random.uniform(kb, (d_out,), jnp.float32, -bound_b, bound_b)
        hidden.append((w.T.astype(jnp.bfloat16), b.reshape(1, d_out)))
        d = d_out
    key, kw, kb = jax.random.split(key, 3)
    bound_w = math.sqrt(6.0 / (d + 1))
    w_last = jax.random.uniform(kw, (1, d), jnp.float32, -bound_w, bound_w)
    bound_b = 1.0 / math.sqrt(d)
    b_last = jax.random.uniform(kb, (1,), jnp.float32, -bound_b, bound_b).reshape(1, 1)
    return hidden, (w_last, b_last)


# ---------------------------------------------------------------------------
# Predictor forward: one fused pallas_call over row tiles
# ---------------------------------------------------------------------------
def predictor_forward(data, params, *, tile_m_cap: int = 1024):
    """data: (B, S, D) float32  ->  (B, S, 1) float32."""
    hidden, (w_last, b_last) = params
    num_hidden = len(hidden)

    B, S, D = data.shape
    M = B * S
    x = data.reshape(M, D)

    tile_m = _choose_tile_m(M, tile_m_cap)
    m_pad = _round_up(M, tile_m)
    if m_pad != M:
        x = jnp.pad(x, ((0, m_pad - M), (0, 0)))
    num_tiles = pl.cdiv(m_pad, tile_m)

    # Flattened operands + BlockSpecs: tiled input, resident weights/biases.
    operands = [x]
    in_specs = [pl.BlockSpec((tile_m, D), lambda i: (i, 0))]
    for w, b in hidden:
        operands += [w, b]
        in_specs += [
            pl.BlockSpec(w.shape, lambda i: (0, 0)),
            pl.BlockSpec(b.shape, lambda i: (0, 0)),
        ]
    operands += [w_last, b_last]
    in_specs += [
        pl.BlockSpec(w_last.shape, lambda i: (0, 0)),
        pl.BlockSpec(b_last.shape, lambda i: (0, 0)),
    ]

    out = pl.pallas_call(
        functools.partial(_predictor_kernel, num_hidden=num_hidden),
        out_shape=jax.ShapeDtypeStruct((m_pad, 1), jnp.float32),
        grid=(num_tiles,),
        in_specs=in_specs,
        out_specs=pl.BlockSpec((tile_m, 1), lambda i: (i, 0)),
        compiler_params=pltpu.CompilerParams(
            dimension_semantics=("parallel",),          # shards tiles across v7x's 2 TCs
            vmem_limit_bytes=32 * 1024 * 1024,          # safe on v5e/v6e/v7x; usage ~0.3 MiB
        ),
    )(*operands)

    return out[:M].reshape(B, S, 1)


# ---------------------------------------------------------------------------
# Pure-JAX reference mirroring the kernel math (bf16 MXU inputs, f32 accumulation)
# ---------------------------------------------------------------------------
def predictor_reference(data, params):
    hidden, (w_last, b_last) = params
    B, S, D = data.shape
    h = data.reshape(B * S, D).astype(jnp.bfloat16)
    for w, b in hidden:
        y = jnp.dot(h, w, preferred_element_type=jnp.float32) + b
        y = jnp.maximum(y, 0.0)
        h = y.astype(jnp.bfloat16)
    out = jnp.sum(h.astype(jnp.float32) * w_last, axis=-1, keepdims=True) + b_last
    return out.reshape(B, S, 1)


if __name__ == "__main__":
    key = jax.random.PRNGKey(0)
    k_data, k_params = jax.random.split(key)

    # Layers: 32 -> 16 (ReLU), 16 -> 8 (ReLU), 8 -> 1
    B, S, dim, linear_layers = 2, 8, 32, 3
    data = jax.random.normal(k_data, (B, S, dim), jnp.float32)
    params = init_predictor_params(k_params, dim, linear_layers)

    out = predictor_forward(data, params)
    jax.block_until_ready(out)

    ref = predictor_reference(data, params)
    assert out.shape == (B, S, 1)
    assert jnp.allclose(out, ref, atol=1e-4), "mismatch vs reference"

    print("KERNEL_OK")
</pallas_src>

<mosaic_0001>
module attributes {stable_mosaic.version = 11 : i64} {
  func.func @_predictor_kernel(%arg0: i32, %arg1: memref<128x32xf32, #tpu.memory_space<vmem>>, %arg2: memref<32x16xbf16, #tpu.memory_space<vmem>>, %arg3: memref<1x16xf32, #tpu.memory_space<vmem>>, %arg4: memref<16x8xbf16, #tpu.memory_space<vmem>>, %arg5: memref<1x8xf32, #tpu.memory_space<vmem>>, %arg6: memref<1x8xf32, #tpu.memory_space<vmem>>, %arg7: memref<1x1xf32, #tpu.memory_space<vmem>>, %arg8: memref<128x1xf32, #tpu.memory_space<vmem>>) attributes {dimension_semantics = [#tpu.dimension_semantics<parallel>], iteration_bounds = array<i64: 1>, scalar_prefetch = 0 : i64, scratch_operands = 0 : i64, tpu.core_type = #tpu.core_type<tc>, window_params = [{transform_indices = @transform_0, window_bounds = array<i64: 128, 32>}, {pipeline_mode = #tpu.pipeline_mode<synchronous>, transform_indices = @transform_1, window_bounds = array<i64: 32, 16>}, {pipeline_mode = #tpu.pipeline_mode<synchronous>, transform_indices = @transform_2, window_bounds = array<i64: 1, 16>}, {pipeline_mode = #tpu.pipeline_mode<synchronous>, transform_indices = @transform_3, window_bounds = array<i64: 16, 8>}, {pipeline_mode = #tpu.pipeline_mode<synchronous>, transform_indices = @transform_4, window_bounds = array<i64: 1, 8>}, {pipeline_mode = #tpu.pipeline_mode<synchronous>, transform_indices = @transform_5, window_bounds = array<i64: 1, 8>}, {pipeline_mode = #tpu.pipeline_mode<synchronous>, transform_indices = @transform_6, window_bounds = array<i64: 1, 1>}, {transform_indices = @transform_7, window_bounds = array<i64: 128, 1>}]} {
    %c0 = arith.constant 0 : index
    %c0_0 = arith.constant 0 : index
    %0 = vector.load %arg1[%c0, %c0_0] : memref<128x32xf32, #tpu.memory_space<vmem>>, vector<128x32xf32>
    %1 = arith.truncf %0 : vector<128x32xf32> to vector<128x32xbf16>
    %c0_1 = arith.constant 0 : index
    %c0_2 = arith.constant 0 : index
    %2 = vector.load %arg2[%c0_1, %c0_2] : memref<32x16xbf16, #tpu.memory_space<vmem>>, vector<32x16xbf16>
    %c0_3 = arith.constant 0 : index
    %c0_4 = arith.constant 0 : index
    %3 = vector.load %arg3[%c0_3, %c0_4] : memref<1x16xf32, #tpu.memory_space<vmem>>, vector<1x16xf32>
    %cst = arith.constant dense<0.000000e+00> : vector<128x16xf32>
    %4 = tpu.matmul %1, %2, %cst {dimension_numbers = #tpu.dot_dimension_numbers<[1], [0], [0], [1], [0, 0, 1, 1], [], []>} : vector<128x32xbf16>, vector<32x16xbf16>, vector<128x16xf32> -> vector<128x16xf32>
    %5 = vector.broadcast %3 : vector<1x16xf32> to vector<128x16xf32>
    %6 = arith.addf %4, %5 : vector<128x16xf32>
    %cst_5 = arith.constant 0.000000e+00 : f32
    %7 = vector.broadcast %cst_5 : f32 to vector<128x16xf32>
    %8 = arith.maximumf %6, %7 : vector<128x16xf32>
    %9 = arith.truncf %8 : vector<128x16xf32> to vector<128x16xbf16>
    %c0_6 = arith.constant 0 : index
    %c0_7 = arith.constant 0 : index
    %10 = vector.load %arg4[%c0_6, %c0_7] : memref<16x8xbf16, #tpu.memory_space<vmem>>, vector<16x8xbf16>
    %c0_8 = arith.constant 0 : index
    %c0_9 = arith.constant 0 : index
    %11 = vector.load %arg5[%c0_8, %c0_9] : memref<1x8xf32, #tpu.memory_space<vmem>>, vector<1x8xf32>
    %cst_10 = arith.constant dense<0.000000e+00> : vector<128x8xf32>
    %12 = tpu.matmul %9, %10, %cst_10 {dimension_numbers = #tpu.dot_dimension_numbers<[1], [0], [0], [1], [0, 0, 1, 1], [], []>} : vector<128x16xbf16>, vector<16x8xbf16>, vector<128x8xf32> -> vector<128x8xf32>
    %13 = vector.broadcast %11 : vector<1x8xf32> to vector<128x8xf32>
    %14 = arith.addf %12, %13 : vector<128x8xf32>
    %cst_11 = arith.constant 0.000000e+00 : f32
    %15 = vector.broadcast %cst_11 : f32 to vector<128x8xf32>
    %16 = arith.maximumf %14, %15 : vector<128x8xf32>
    %17 = arith.truncf %16 : vector<128x8xf32> to vector<128x8xbf16>
    %c0_12 = arith.constant 0 : index
    %c0_13 = arith.constant 0 : index
    %18 = vector.load %arg6[%c0_12, %c0_13] : memref<1x8xf32, #tpu.memory_space<vmem>>, vector<1x8xf32>
    %c0_14 = arith.constant 0 : index
    %c0_15 = arith.constant 0 : index
    %19 = vector.load %arg7[%c0_14, %c0_15] : memref<1x1xf32, #tpu.memory_space<vmem>>, vector<1x1xf32>
    %20 = arith.extf %17 : vector<128x8xbf16> to vector<128x8xf32>
    %21 = vector.broadcast %18 : vector<1x8xf32> to vector<128x8xf32>
    %22 = arith.mulf %20, %21 : vector<128x8xf32>
    %cst_16 = arith.constant dense<0.000000e+00> : vector<128xf32>
    %23 = vector.multi_reduction <add>, %22, %cst_16 [1] : vector<128x8xf32> to vector<128xf32>
    %24 = vector.shape_cast %23 : vector<128xf32> to vector<128x1xf32>
    %25 = vector.broadcast %19 : vector<1x1xf32> to vector<128x1xf32>
    %26 = arith.addf %24, %25 : vector<128x1xf32>
    %c0_17 = arith.constant 0 : index
    %c0_18 = arith.constant 0 : index
    %27 = vector.load %arg8[%c0_17, %c0_18] : memref<128x1xf32, #tpu.memory_space<vmem>>, vector<128x1xf32>
    tpu.vector_store %arg8[%c0_17, %c0_18], %26 {strides = array<i32>} : memref<128x1xf32, #tpu.memory_space<vmem>>, vector<128x1xf32>,
    return
  }
  func.func @transform_0(%arg0: i32) -> (i32, i32) {
    %c0_i32 = arith.constant 0 : i32
    %c0_i32_0 = arith.constant 0 : i32
    return %arg0, %c0_i32 : i32, i32
  }
  func.func @transform_1(%arg0: i32) -> (i32, i32) {
    %c0_i32 = arith.constant 0 : i32
    %c0_i32_0 = arith.constant 0 : i32
    %c0_i32_1 = arith.constant 0 : i32
    return %c0_i32, %c0_i32_0 : i32, i32
  }
  func.func @transform_2(%arg0: i32) -> (i32, i32) {
    %c0_i32 = arith.constant 0 : i32
    %c0_i32_0 = arith.constant 0 : i32
    %c0_i32_1 = arith.constant 0 : i32
    return %c0_i32, %c0_i32_0 : i32, i32
  }
  func.func @transform_3(%arg0: i32) -> (i32, i32) {
    %c0_i32 = arith.constant 0 : i32
    %c0_i32_0 = arith.constant 0 : i32
    %c0_i32_1 = arith.constant 0 : i32
    return %c0_i32, %c0_i32_0 : i32, i32
  }
  func.func @transform_4(%arg0: i32) -> (i32, i32) {
    %c0_i32 = arith.constant 0 : i32
    %c0_i32_0 = arith.constant 0 : i32
    %c0_i32_1 = arith.constant 0 : i32
    return %c0_i32, %c0_i32_0 : i32, i32
  }
  func.func @transform_5(%arg0: i32) -> (i32, i32) {
    %c0_i32 = arith.constant 0 : i32
    %c0_i32_0 = arith.constant 0 : i32
    %c0_i32_1 = arith.constant 0 : i32
    return %c0_i32, %c0_i32_0 : i32, i32
  }
  func.func @transform_6(%arg0: i32) -> (i32, i32) {
    %c0_i32 = arith.constant 0 : i32
    %c0_i32_0 = arith.constant 0 : i32
    %c0_i32_1 = arith.constant 0 : i32
    return %c0_i32, %c0_i32_0 : i32, i32
  }
  func.func @transform_7(%arg0: i32) -> (i32, i32) {
    %c0_i32 = arith.constant 0 : i32
    %c0_i32_0 = arith.constant 0 : i32
    return %arg0, %c0_i32 : i32, i32
  }
}

</mosaic_0001>

<llo_original>
// kernel: tpu_custom_call.1
$region0: #{tpu_custom_call.1}
  #allocation0 [shape = 'u32[]', space=smem, size = 0x4, offset = 0x4, fixed_abs, tag = 'smem constant byte address 0x4 - core index']
  #allocation1 [shape = 'u32[144,128]{1,0:T(1,128)}', space=vmem, size = 0x12000, scoped, tag = 'internal scratch']
  #allocation2 [shape = 'f32[1,1]{1,0:T(1,128)S(1)}', space=vmem, size = 0x200, scoped, tag = 'scoped memory for tpu_custom_call.1']
  %s0 = inlined_call_operand.vmem [shape: f32[128,32], index: 0, kind: input, shape index: {}]
  %s1 = inlined_call_operand.vmem [shape: bf16[32,16], index: 1, kind: input, shape index: {}]
  %s2 = inlined_call_operand.vmem [shape: f32[1,16], index: 2, kind: input, shape index: {}]
  %s3 = inlined_call_operand.vmem [shape: bf16[16,8], index: 3, kind: input, shape index: {}]
  %s4 = inlined_call_operand.vmem [shape: f32[1,8], index: 4, kind: input, shape index: {}]
  %s5 = inlined_call_operand.vmem [shape: f32[1,8], index: 5, kind: input, shape index: {}]
  %s6 = inlined_call_operand.<no memory space> [shape: f32[1,1], index: 6, kind: input, shape index: {}]
  %s7 = inlined_call_operand.vmem [shape: f32[128,1], index: 7, kind: output, shape index: {}]
  %s8 = sld [smem:[#allocation0]]
  $region38: #{tpu_custom_call.1} parent=0
    _
  %s10 = ssub.s32 1, %s8
  %s11 = scalar_select 0, %s10, %s8
  %v12 = vstv %s6
  %13 = vst [vmem:[#allocation2] sm:$0x1] %v12
  // Predicated region
  $region2: #{tpu_custom_call.1} parent=0 // pred_check
    _
  $region3: #{tpu_custom_call.1} parent=0 // pred_check_branch
    %15 = sbr.rel (0) target = $region5
  $region4: #{tpu_custom_call.1} parent=0 // pred_region
    _
  $region5: #{tpu_custom_call.1} parent=0 // pred_fallthru
    _
  // Predicated region
  $region6: #{tpu_custom_call.1} parent=0 // pred_check
    _
  $region7: #{tpu_custom_call.1} parent=0 // pred_check_branch
    %17 = sbr.rel (0) target = $region9
  $region8: #{tpu_custom_call.1} parent=0 // pred_region
    _
  $region9: #{tpu_custom_call.1} parent=0 // pred_fallthru
    _
  // Predicated region
  $region10: #{tpu_custom_call.1} parent=0 // pred_check
    _
  $region11: #{tpu_custom_call.1} parent=0 // pred_check_branch
    %19 = sbr.rel (0) target = $region13
  $region12: #{tpu_custom_call.1} parent=0 // pred_region
    _
  $region13: #{tpu_custom_call.1} parent=0 // pred_fallthru
    _
  // Predicated region
  $region14: #{tpu_custom_call.1} parent=0 // pred_check
    _
  $region15: #{tpu_custom_call.1} parent=0 // pred_check_branch
    %21 = sbr.rel (0) target = $region17
  $region16: #{tpu_custom_call.1} parent=0 // pred_region
    _
  $region17: #{tpu_custom_call.1} parent=0 // pred_fallthru
    _
  // Predicated region
  $region18: #{tpu_custom_call.1} parent=0 // pred_check
    _
  $region19: #{tpu_custom_call.1} parent=0 // pred_check_branch
    %23 = sbr.rel (0) target = $region21
  $region20: #{tpu_custom_call.1} parent=0 // pred_region
    _
  $region21: #{tpu_custom_call.1} parent=0 // pred_fallthru
    _
  // Predicated region
  $region22: #{tpu_custom_call.1} parent=0 // pred_check
    _
  $region23: #{tpu_custom_call.1} parent=0 // pred_check_branch
    %25 = sbr.rel (0) target = $region25
  $region24: #{tpu_custom_call.1} parent=0 // pred_region
    _
  $region25: #{tpu_custom_call.1} parent=0 // pred_fallthru
    _
  // Predicated region
  $region26: #{tpu_custom_call.1} parent=0 // pred_check
    _
  $region27: #{tpu_custom_call.1} parent=0 // pred_check_branch
    %27 = sbr.rel (0) target = $region29
  $region28: #{tpu_custom_call.1} parent=0 // pred_region
    _
  $region29: #{tpu_custom_call.1} parent=0 // pred_fallthru
    _
  %v29 = vld [vmem:[%s0] sm:$0xff]
  %v30 = vld [vmem:[%s0 + $0x8] sm:$0xff]
  %v31 = vld [vmem:[%s0 + $0x10] sm:$0xff]
  %v32 = vld [vmem:[%s0 + $0x18] sm:$0xff]
  %v33 = vld [vmem:[%s0 + $0x20] sm:$0xff]
  %v34 = vld [vmem:[%s0 + $0x28] sm:$0xff]
  %v35 = vld [vmem:[%s0 + $0x30] sm:$0xff]
  %v36 = vld [vmem:[%s0 + $0x38] sm:$0xff]
  %v37 = vld [vmem:[%s0 + $0x40] sm:$0xff]
  %v38 = vld [vmem:[%s0 + $0x48] sm:$0xff]
  %v39 = vld [vmem:[%s0 + $0x50] sm:$0xff]
  %v40 = vld [vmem:[%s0 + $0x58] sm:$0xff]
  %v41 = vld [vmem:[%s0 + $0x60] sm:$0xff]
  %v42 = vld [vmem:[%s0 + $0x68] sm:$0xff]
  %v43 = vld [vmem:[%s0 + $0x70] sm:$0xff]
  %v44 = vld [vmem:[%s0 + $0x78] sm:$0xff]
  %v45 = vpack.c.bf16 %v30, %v29
  %v46 = vpack.c.bf16 %v32, %v31
  %v47 = vpack.c.bf16 %v34, %v33
  %v48 = vpack.c.bf16 %v36, %v35
  %v49 = vpack.c.bf16 %v38, %v37
  %v50 = vpack.c.bf16 %v40, %v39
  %v51 = vpack.c.bf16 %v42, %v41
  %v52 = vpack.c.bf16 %v44, %v43
  %v53 = vld [vmem:[%s1] sm:$0xf]
  %v54 = vld [vmem:[%s1 + $0x4] sm:$0xf]
  %v55 = vld [vmem:[%s1 + $0x8] sm:$0xf]
  %v56 = vld [vmem:[%s1 + $0xc] sm:$0xf]
  %v57 = vld [vmem:[%s2] sm:$0x1]
  %v59 = vlaneseq
  %v60 = vshrl.u32 %v59, 7
  %v61 = vsub.s32 0, %v60
  %v62 = vrot.slane %v57, %v61
  %v68 = vunpack.c.l.b16 %v53
  %v69 = vunpack.c.l.b16 %v54
  %v70 = vunpack.c.l.b16 %v55
  %v71 = vunpack.c.l.b16 %v56
  %v72 = vpack.c.b16 %v69, %v68
  %v73 = vpack.c.b16 %v71, %v70
  %vm76 = vcmask 261120
  %v78 = vsel %vm76, %v45, 0
  %v81 = vsel %vm76, %v46, 0
  %v84 = vsel %vm76, %v47, 0
  %v87 = vsel %vm76, %v48, 0
  %v90 = vsel %vm76, %v49, 0
  %v93 = vsel %vm76, %v50, 0
  %v96 = vsel %vm76, %v51, 0
  %v99 = vsel %vm76, %v52, 0
  %101 = vmatprep.subr.bf16.mxu0 0
  %102 = vmatpush1.bf16.msra.mxu0 %v72
  %103 = vmatprep.subr.bf16.mxu0 0
  %104 = vmatpush1.bf16.msra.mxu0 %v73
  %105 = vmatprep.subr.bf16.mxu0 0
  %106 = vmatpush1.bf16.msra.mxu0 0
  %107 = vmatprep.subr.bf16.mxu0 0
  %108 = vmatpush1.bf16.msra.mxu0 0
  %109 = vmatprep.subr.bf16.mxu0 0
  %110 = vmatpush1.bf16.msra.mxu0 0
  %111 = vmatprep.subr.bf16.mxu0 0
  %112 = vmatpush1.bf16.msra.mxu0 0
  %113 = vmatprep.subr.bf16.mxu0 0
  %114 = vmatpush1.bf16.msra.mxu0 0
  %115 = vmatprep.subr.bf16.mxu0 0
  %116 = vmatpush1.bf16.msra.mxu0 0
  %117 = vmatprep.subr.bf16.mxu0 0
  %118 = vmatpush1.bf16.msra.mxu0 0
  %119 = vmatprep.subr.bf16.mxu0 0
  %120 = vmatpush1.bf16.msra.mxu0 0
  %121 = vmatprep.subr.bf16.mxu0 0
  %122 = vmatpush1.bf16.msra.mxu0 0
  %123 = vmatprep.subr.bf16.mxu0 0
  %124 = vmatpush1.bf16.msra.mxu0 0
  %125 = vmatprep.subr.bf16.mxu0 0
  %126 = vmatpush1.bf16.msra.mxu0 0
  %127 = vmatprep.subr.bf16.mxu0 0
  %128 = vmatpush1.bf16.msra.mxu0 0
  %129 = vmatprep.subr.bf16.mxu0 0
  %130 = vmatpush1.bf16.msra.mxu0 0
  %131 = vmatprep.subr.bf16.mxu0 0
  %132 = vmatpush1.bf16.msra.mxu0 0
  %133 = vmatprep.mubr.bf16.mxu0 0
  %134 = vmatmul.mubr.bf16.gmra.mrb[0].mxu0 %v78
  %v135 = vpop.f32.mrb[0].mxu0
  %v136 = vadd.f32 %v62, %v135
  %v137 = vpop.f32.mrb[0].mxu0
  %v138 = vpop.f32.mrb[0].mxu0
  %v139 = vadd.f32 %v62, %v138
  %v140 = vpop.f32.mrb[0].mxu0
  %141 = vmatprep.mubr.bf16.mxu0 0
  %142 = vmatmul.mubr.bf16.gmra.mrb[0].mxu0 %v81
  %v143 = vpop.f32.mrb[0].mxu0
  %v144 = vadd.f32 %v62, %v143
  %v145 = vpop.f32.mrb[0].mxu0
  %v146 = vpop.f32.mrb[0].mxu0
  %v147 = vadd.f32 %v62, %v146
  %v148 = vpop.f32.mrb[0].mxu0
  %149 = vmatprep.mubr.bf16.mxu0 0
  %150 = vmatmul.mubr.bf16.gmra.mrb[0].mxu0 %v84
  %v151 = vpop.f32.mrb[0].mxu0
  %v152 = vadd.f32 %v62, %v151
  %v153 = vpop.f32.mrb[0].mxu0
  %v154 = vpop.f32.mrb[0].mxu0
  %v155 = vadd.f32 %v62, %v154
  %v156 = vpop.f32.mrb[0].mxu0
  %157 = vmatprep.mubr.bf16.mxu0 0
  %158 = vmatmul.mubr.bf16.gmra.mrb[0].mxu0 %v87
  %v159 = vpop.f32.mrb[0].mxu0
  %v160 = vadd.f32 %v62, %v159
  %v161 = vpop.f32.mrb[0].mxu0
  %v162 = vpop.f32.mrb[0].mxu0
  %v163 = vadd.f32 %v62, %v162
  %v164 = vpop.f32.mrb[0].mxu0
  %165 = vmatprep.mubr.bf16.mxu0 0
  %166 = vmatmul.mubr.bf16.gmra.mrb[0].mxu0 %v90
  %v167 = vpop.f32.mrb[0].mxu0
  %v168 = vadd.f32 %v62, %v167
  %v169 = vpop.f32.mrb[0].mxu0
  %v170 = vpop.f32.mrb[0].mxu0
  %v171 = vadd.f32 %v62, %v170
  %v172 = vpop.f32.mrb[0].mxu0
  %173 = vmatprep.mubr.bf16.mxu0 0
  %174 = vmatmul.mubr.bf16.gmra.mrb[0].mxu0 %v93
  %v175 = vpop.f32.mrb[0].mxu0
  %v176 = vadd.f32 %v62, %v175
  %v177 = vpop.f32.mrb[0].mxu0
  %v178 = vpop.f32.mrb[0].mxu0
  %v179 = vadd.f32 %v62, %v178
  %v180 = vpop.f32.mrb[0].mxu0
  %181 = vmatprep.mubr.bf16.mxu0 0
  %182 = vmatmul.mubr.bf16.gmra.mrb[0].mxu0 %v96
  %v183 = vpop.f32.mrb[0].mxu0
  %v184 = vadd.f32 %v62, %v183
  %v185 = vpop.f32.mrb[0].mxu0
  %v186 = vpop.f32.mrb[0].mxu0
  %v187 = vadd.f32 %v62, %v186
  %v188 = vpop.f32.mrb[0].mxu0
  %189 = vmatprep.mubr.bf16.mxu0 0
  %190 = vmatmul.mubr.bf16.gmra.mrb[0].mxu0 %v99
  %v191 = vpop.f32.mrb[0].mxu0
  %v192 = vadd.f32 %v62, %v191
  %v193 = vpop.f32.mrb[0].mxu0
  %v194 = vpop.f32.mrb[0].mxu0
  %v195 = vadd.f32 %v62, %v194
  %v196 = vpop.f32.mrb[0].mxu0
  %197 = vdwg.mxu0
  %v198 = vmax.f32 %v136, 0.0
  %v199 = vmax.f32 %v139, 0.0
  %v200 = vmax.f32 %v144, 0.0
  %v201 = vmax.f32 %v147, 0.0
  %v202 = vmax.f32 %v152, 0.0
  %v203 = vmax.f32 %v155, 0.0
  %v204 = vmax.f32 %v160, 0.0
  %v205 = vmax.f32 %v163, 0.0
  %v206 = vmax.f32 %v168, 0.0
  %v207 = vmax.f32 %v171, 0.0
  %v208 = vmax.f32 %v176, 0.0
  %v209 = vmax.f32 %v179, 0.0
  %v210 = vmax.f32 %v184, 0.0
  %v211 = vmax.f32 %v187, 0.0
  %v212 = vmax.f32 %v192, 0.0
  %v213 = vmax.f32 %v195, 0.0
  %v214 = vpack.c.bf16 %v199, %v198
  %v215 = vpack.c.bf16 %v201, %v200
  %v216 = vpack.c.bf16 %v203, %v202
  %v217 = vpack.c.bf16 %v205, %v204
  %v218 = vpack.c.bf16 %v207, %v206
  %v219 = vpack.c.bf16 %v209, %v208
  %v220 = vpack.c.bf16 %v211, %v210
  %v221 = vpack.c.bf16 %v213, %v212
  %v222 = vld [vmem:[%s3] sm:$0xf]
  %v223 = vld [vmem:[%s3 + $0x4] sm:$0xf]
  %v224 = vld [vmem:[%s4] sm:$0x1]
  %v226 = vlaneseq
  %v227 = vshrl.u32 %v226, 7
  %v228 = vsub.s32 0, %v227
  %v229 = vrot.slane %v224, %v228
  %v233 = vunpack.c.l.b16 %v222
  %v234 = vunpack.c.l.b16 %v223
  %v235 = vpack.c.b16 %v234, %v233
  %vm237 = vcmask 130048
  %v239 = vsel %vm237, %v214, 0
  %v242 = vsel %vm237, %v215, 0
  %v245 = vsel %vm237, %v216, 0
  %v248 = vsel %vm237, %v217, 0
  %v251 = vsel %vm237, %v218, 0
  %v254 = vsel %vm237, %v219, 0
  %v257 = vsel %vm237, %v220, 0
  %v260 = vsel %vm237, %v221, 0
  %262 = vmatprep.subr.bf16.mxu0 0
  %263 = vmatpush1.bf16.msra.mxu0 %v235
  %264 = vmatprep.subr.bf16.mxu0 0
  %265 = vmatpush1.bf16.msra.mxu0 0
  %266 = vmatprep.subr.bf16.mxu0 0
  %267 = vmatpush1.bf16.msra.mxu0 0
  %268 = vmatprep.subr.bf16.mxu0 0
  %269 = vmatpush1.bf16.msra.mxu0 0
  %270 = vmatprep.subr.bf16.mxu0 0
  %271 = vmatpush1.bf16.msra.mxu0 0
  %272 = vmatprep.subr.bf16.mxu0 0
  %273 = vmatpush1.bf16.msra.mxu0 0
  %274 = vmatprep.subr.bf16.mxu0 0
  %275 = vmatpush1.bf16.msra.mxu0 0
  %276 = vmatprep.subr.bf16.mxu0 0
  %277 = vmatpush1.bf16.msra.mxu0 0
  %278 = vmatprep.subr.bf16.mxu0 0
  %279 = vmatpush1.bf16.msra.mxu0 0
  %280 = vmatprep.subr.bf16.mxu0 0
  %281 = vmatpush1.bf16.msra.mxu0 0
  %282 = vmatprep.subr.bf16.mxu0 0
  %283 = vmatpush1.bf16.msra.mxu0 0
  %284 = vmatprep.subr.bf16.mxu0 0
  %285 = vmatpush1.bf16.msra.mxu0 0
  %286 = vmatprep.subr.bf16.mxu0 0
  %287 = vmatpush1.bf16.msra.mxu0 0
  %288 = vmatprep.subr.bf16.mxu0 0
  %289 = vmatpush1.bf16.msra.mxu0 0
  %290 = vmatprep.subr.bf16.mxu0 0
  %291 = vmatpush1.bf16.msra.mxu0 0
  %292 = vmatprep.subr.bf16.mxu0 0
  %293 = vmatpush1.bf16.msra.mxu0 0
  %294 = vmatprep.mubr.bf16.mxu0 0
  %295 = vmatmul.mubr.bf16.gmra.mrb[0].mxu0 %v239
  %v296 = vpop.f32.mrb[0].mxu0
  %v297 = vadd.f32 %v229, %v296
  %v298 = vpop.f32.mrb[0].mxu0
  %v299 = vpop.f32.mrb[0].mxu0
  %v300 = vadd.f32 %v229, %v299
  %v301 = vpop.f32.mrb[0].mxu0
  %302 = vmatprep.mubr.bf16.mxu0 0
  %303 = vmatmul.mubr.bf16.gmra.mrb[0].mxu0 %v242
  %v304 = vpop.f32.mrb[0].mxu0
  %v305 = vadd.f32 %v229, %v304
  %v306 = vpop.f32.mrb[0].mxu0
  %v307 = vpop.f32.mrb[0].mxu0
  %v308 = vadd.f32 %v229, %v307
  %v309 = vpop.f32.mrb[0].mxu0
  %310 = vmatprep.mubr.bf16.mxu0 0
  %311 = vmatmul.mubr.bf16.gmra.mrb[0].mxu0 %v245
  %v312 = vpop.f32.mrb[0].mxu0
  %v313 = vadd.f32 %v229, %v312
  %v314 = vpop.f32.mrb[0].mxu0
  %v315 = vpop.f32.mrb[0].mxu0
  %v316 = vadd.f32 %v229, %v315
  %v317 = vpop.f32.mrb[0].mxu0
  %318 = vmatprep.mubr.bf16.mxu0 0
  %319 = vmatmul.mubr.bf16.gmra.mrb[0].mxu0 %v248
  %v320 = vpop.f32.mrb[0].mxu0
  %v321 = vadd.f32 %v229, %v320
  %v322 = vpop.f32.mrb[0].mxu0
  %v323 = vpop.f32.mrb[0].mxu0
  %v324 = vadd.f32 %v229, %v323
  %v325 = vpop.f32.mrb[0].mxu0
  %326 = vmatprep.mubr.bf16.mxu0 0
  %327 = vmatmul.mubr.bf16.gmra.mrb[0].mxu0 %v251
  %v328 = vpop.f32.mrb[0].mxu0
  %v329 = vadd.f32 %v229, %v328
  %v330 = vpop.f32.mrb[0].mxu0
  %v331 = vpop.f32.mrb[0].mxu0
  %v332 = vadd.f32 %v229, %v331
  %v333 = vpop.f32.mrb[0].mxu0
  %334 = vmatprep.mubr.bf16.mxu0 0
  %335 = vmatmul.mubr.bf16.gmra.mrb[0].mxu0 %v254
  %v336 = vpop.f32.mrb[0].mxu0
  %v337 = vadd.f32 %v229, %v336
  %v338 = vpop.f32.mrb[0].mxu0
  %v339 = vpop.f32.mrb[0].mxu0
  %v340 = vadd.f32 %v229, %v339
  %v341 = vpop.f32.mrb[0].mxu0
  %342 = vmatprep.mubr.bf16.mxu0 0
  %343 = vmatmul.mubr.bf16.gmra.mrb[0].mxu0 %v257
  %v344 = vpop.f32.mrb[0].mxu0
  %v345 = vadd.f32 %v229, %v344
  %v346 = vpop.f32.mrb[0].mxu0
  %v347 = vpop.f32.mrb[0].mxu0
  %v348 = vadd.f32 %v229, %v347
  %v349 = vpop.f32.mrb[0].mxu0
  %350 = vmatprep.mubr.bf16.mxu0 0
  %351 = vmatmul.mubr.bf16.gmra.mrb[0].mxu0 %v260
  %v352 = vpop.f32.mrb[0].mxu0
  %v353 = vadd.f32 %v229, %v352
  %v354 = vpop.f32.mrb[0].mxu0
  %v355 = vpop.f32.mrb[0].mxu0
  %v356 = vadd.f32 %v229, %v355
  %v357 = vpop.f32.mrb[0].mxu0
  %358 = vdwg.mxu0
  %v359 = vmax.f32 %v297, 0.0
  %v360 = vmax.f32 %v300, 0.0
  %v361 = vmax.f32 %v305, 0.0
  %v362 = vmax.f32 %v308, 0.0
  %v363 = vmax.f32 %v313, 0.0
  %v364 = vmax.f32 %v316, 0.0
  %v365 = vmax.f32 %v321, 0.0
  %v366 = vmax.f32 %v324, 0.0
  %v367 = vmax.f32 %v329, 0.0
  %v368 = vmax.f32 %v332, 0.0
  %v369 = vmax.f32 %v337, 0.0
  %v370 = vmax.f32 %v340, 0.0
  %v371 = vmax.f32 %v345, 0.0
  %v372 = vmax.f32 %v348, 0.0
  %v373 = vmax.f32 %v353, 0.0
  %v374 = vmax.f32 %v356, 0.0
  %v375 = vpack.c.bf16 %v360, %v359
  %v376 = vpack.c.bf16 %v362, %v361
  %v377 = vpack.c.bf16 %v364, %v363
  %v378 = vpack.c.bf16 %v366, %v365
  %v379 = vpack.c.bf16 %v368, %v367
  %v380 = vpack.c.bf16 %v370, %v369
  %v381 = vpack.c.bf16 %v372, %v371
  %v382 = vpack.c.bf16 %v374, %v373
  %v383 = vld [vmem:[%s5] sm:$0x1]
  %v384 = vld [vmem:[#allocation2] sm:$0x1]
  %v385 = vunpack.c.l.bf16 %v375
  %v386 = vunpack.c.h.bf16 %v375
  %v387 = vunpack.c.l.bf16 %v376
  %v388 = vunpack.c.h.bf16 %v376
  %v389 = vunpack.c.l.bf16 %v377
  %v390 = vunpack.c.h.bf16 %v377
  %v391 = vunpack.c.l.bf16 %v378
  %v392 = vunpack.c.h.bf16 %v378
  %v393 = vunpack.c.l.bf16 %v379
  %v394 = vunpack.c.h.bf16 %v379
  %v395 = vunpack.c.l.bf16 %v380
  %v396 = vunpack.c.h.bf16 %v380
  %v397 = vunpack.c.l.bf16 %v381
  %v398 = vunpack.c.h.bf16 %v381
  %v399 = vunpack.c.l.bf16 %v382
  %v400 = vunpack.c.h.bf16 %v382
  %v402 = vlaneseq
  %v403 = vshrl.u32 %v402, 7
  %v404 = vsub.s32 0, %v403
  %v405 = vrot.slane %v383, %v404
  %v407 = vmul.f32 %v385, %v405
  %v408 = vmul.f32 %v386, %v405
  %v409 = vmul.f32 %v387, %v405
  %v410 = vmul.f32 %v388, %v405
  %v411 = vmul.f32 %v389, %v405
  %v412 = vmul.f32 %v390, %v405
  %v413 = vmul.f32 %v391, %v405
  %v414 = vmul.f32 %v392, %v405
  %v415 = vmul.f32 %v393, %v405
  %v416 = vmul.f32 %v394, %v405
  %v417 = vmul.f32 %v395, %v405
  %v418 = vmul.f32 %v396, %v405
  %v419 = vmul.f32 %v397, %v405
  %v420 = vmul.f32 %v398, %v405
  %v421 = vmul.f32 %v399, %v405
  %v422 = vmul.f32 %v400, %v405
  %vm423 = vcmask 64512
  %v424 = vsel %vm423, %v407, 0.0
  %425 = vadd.xlane.f32.xlu0 %v424
  %v426 = vpop.xlane.xlu0 %425
  %v427 = vsel %vm423, %v408, 0.0
  %428 = vadd.xlane.f32.xlu0 %v427
  %v429 = vpop.xlane.xlu0 %428
  %v430 = vsel %vm423, %v409, 0.0
  %431 = vadd.xlane.f32.xlu0 %v430
  %v432 = vpop.xlane.xlu0 %431
  %v433 = vsel %vm423, %v410, 0.0
  %434 = vadd.xlane.f32.xlu0 %v433
  %v435 = vpop.xlane.xlu0 %434
  %v436 = vsel %vm423, %v411, 0.0
  %437 = vadd.xlane.f32.xlu0 %v436
  %v438 = vpop.xlane.xlu0 %437
  %v439 = vsel %vm423, %v412, 0.0
  %440 = vadd.xlane.f32.xlu0 %v439
  %v441 = vpop.xlane.xlu0 %440
  %v442 = vsel %vm423, %v413, 0.0
  %443 = vadd.xlane.f32.xlu0 %v442
  %v444 = vpop.xlane.xlu0 %443
  %v445 = vsel %vm423, %v414, 0.0
  %446 = vadd.xlane.f32.xlu0 %v445
  %v447 = vpop.xlane.xlu0 %446
  %v448 = vsel %vm423, %v415, 0.0
  %449 = vadd.xlane.f32.xlu0 %v448
  %v450 = vpop.xlane.xlu0 %449
  %v451 = vsel %vm423, %v416, 0.0
  %452 = vadd.xlane.f32.xlu0 %v451
  %v453 = vpop.xlane.xlu0 %452
  %v454 = vsel %vm423, %v417, 0.0
  %455 = vadd.xlane.f32.xlu0 %v454
  %v456 = vpop.xlane.xlu0 %455
  %v457 = vsel %vm423, %v418, 0.0
  %458 = vadd.xlane.f32.xlu0 %v457
  %v459 = vpop.xlane.xlu0 %458
  %v460 = vsel %vm423, %v419, 0.0
  %461 = vadd.xlane.f32.xlu0 %v460
  %v462 = vpop.xlane.xlu0 %461
  %v463 = vsel %vm423, %v420, 0.0
  %464 = vadd.xlane.f32.xlu0 %v463
  %v465 = vpop.xlane.xlu0 %464
  %v466 = vsel %vm423, %v421, 0.0
  %467 = vadd.xlane.f32.xlu0 %v466
  %v468 = vpop.xlane.xlu0 %467
  %v469 = vsel %vm423, %v422, 0.0
  %470 = vadd.xlane.f32.xlu0 %v469
  %v471 = vpop.xlane.xlu0 %470
  %v473 = vlaneseq
  %v474 = vshrl.u32 %v473, 7
  %v475 = vsub.s32 0, %v474
  %v476 = vrot.slane %v384, %v475
  %v478 = vadd.f32 %v426, %v476
  %v479 = vadd.f32 %v429, %v476
  %v480 = vadd.f32 %v432, %v476
  %v481 = vadd.f32 %v435, %v476
  %v482 = vadd.f32 %v438, %v476
  %v483 = vadd.f32 %v441, %v476
  %v484 = vadd.f32 %v444, %v476
  %v485 = vadd.f32 %v447, %v476
  %v486 = vadd.f32 %v450, %v476
  %v487 = vadd.f32 %v453, %v476
  %v488 = vadd.f32 %v456, %v476
  %v489 = vadd.f32 %v459, %v476
  %v490 = vadd.f32 %v462, %v476
  %v491 = vadd.f32 %v465, %v476
  %v492 = vadd.f32 %v468, %v476
  %v493 = vadd.f32 %v471, %v476
  %vm494 = vcmask 7168
  %495 = vst.msk [vmem:[%s7] sm:$0xff] %vm494, %v478
  %496 = vst.msk [vmem:[%s7 + $0x8] sm:$0xff] %vm494, %v479
  %497 = vst.msk [vmem:[%s7 + $0x10] sm:$0xff] %vm494, %v480
  %498 = vst.msk [vmem:[%s7 + $0x18] sm:$0xff] %vm494, %v481
  %499 = vst.msk [vmem:[%s7 + $0x20] sm:$0xff] %vm494, %v482
  %500 = vst.msk [vmem:[%s7 + $0x28] sm:$0xff] %vm494, %v483
  %501 = vst.msk [vmem:[%s7 + $0x30] sm:$0xff] %vm494, %v484
  %502 = vst.msk [vmem:[%s7 + $0x38] sm:$0xff] %vm494, %v485
  %503 = vst.msk [vmem:[%s7 + $0x40] sm:$0xff] %vm494, %v486
  %504 = vst.msk [vmem:[%s7 + $0x48] sm:$0xff] %vm494, %v487
  %505 = vst.msk [vmem:[%s7 + $0x50] sm:$0xff] %vm494, %v488
  %506 = vst.msk [vmem:[%s7 + $0x58] sm:$0xff] %vm494, %v489
  %507 = vst.msk [vmem:[%s7 + $0x60] sm:$0xff] %vm494, %v490
  %508 = vst.msk [vmem:[%s7 + $0x68] sm:$0xff] %vm494, %v491
  %509 = vst.msk [vmem:[%s7 + $0x70] sm:$0xff] %vm494, %v492
  %510 = vst.msk [vmem:[%s7 + $0x78] sm:$0xff] %vm494, %v493
  // Predicated region
  $region30: #{tpu_custom_call.1} parent=0 // pred_check
    _
  $region31: #{tpu_custom_call.1} parent=0 // pred_check_branch
    %512 = sbr.rel (0) target = $region33
  $region32: #{tpu_custom_call.1} parent=0 // pred_region
    _
  $region33: #{tpu_custom_call.1} parent=0 // pred_fallthru
    _
  // Predicated region
  $region34: #{tpu_custom_call.1} parent=0 // pred_check
    _
  $region35: #{tpu_custom_call.1} parent=0 // pred_check_branch
    %514 = sbr.rel (0) target = $region37
  $region36: #{tpu_custom_call.1} parent=0 // pred_region
    _
  $region37: #{tpu_custom_call.1} parent=0 // pred_fallthru
    _

</llo_original>
